<compile_context>
chip_gen: v7x
topology: tpu7x:2x2x1
jax: 0.10.0
libtpu: 0.0.40
codegen_flags: <defaults>
</compile_context>

<pallas_src>
import jax
import jax.numpy as jnp
import numpy as np
from jax import lax
from jax.experimental import pallas as pl
from jax.experimental.pallas import tpu as pltpu


_ONE_HOT_MAX_N = 4096                  # one-hot MXU gather pays off up to a few K nodes
_TARGET_OUT_TILE_BYTES = 2 * 1024 * 1024
_TARGET_ONEHOT_BYTES = 1 * 1024 * 1024


def _round_up(a: int, b: int) -> int:
    return ((a + b - 1) // b) * b


def _round_down(a: int, b: int) -> int:
    return (a // b) * b


def _vmem_capacity_bytes() -> int:
    try:
        return int(pltpu.get_tpu_info().vmem_capacity_bytes)
    except Exception:
        return 64 * 1024 * 1024        # v7x per-TensorCore VMEM; conservative default


def _bf16_planes(x: jax.Array) -> jax.Array:
    """Exact bf16 decomposition: sum(planes, 0) reconstructs x bit-exactly."""
    if x.dtype == jnp.bfloat16:
        return x[None, ...]
    # float32: three bf16 planes capture all 24 mantissa bits exactly.
    x32 = x.astype(jnp.float32)
    p0 = x32.astype(jnp.bfloat16)
    r1 = x32 - p0.astype(jnp.float32)
    p1 = r1.astype(jnp.bfloat16)
    r2 = r1 - p1.astype(jnp.float32)
    p2 = r2.astype(jnp.bfloat16)
    return jnp.stack([p0, p1, p2], axis=0)


def _edge_concat_kernel(edges_ref, planes_ref, out_ref):
    # edges_ref:  (1, TE, 2) int32  -- [:, :, 0] = src ids, [:, :, 1] = tgt ids
    # planes_ref: (P, N, D)  bf16   -- VMEM-resident exact bf16 planes of x
    # out_ref:    (TE, 2*D)         -- one dense output tile per grid step
    p, n, d = planes_ref.shape
    te = out_ref.shape[0]

    edges = edges_ref[0]                                              # (TE, 2)
    node_iota = lax.broadcasted_iota(jnp.int32, (te, n), 1)
    src_oh = (edges[:, 0:1] == node_iota).astype(planes_ref.dtype)    # (TE, N)
    tgt_oh = (edges[:, 1:2] == node_iota).astype(planes_ref.dtype)    # (TE, N)

    src_rows = jnp.zeros((te, d), jnp.float32)
    tgt_rows = jnp.zeros((te, d), jnp.float32)
    for k in range(p):                                                # static, p in {1, 3}
        plane = planes_ref[k]                                         # (N, D) bf16
        src_rows = src_rows + jnp.dot(src_oh, plane,
                                      preferred_element_type=jnp.float32)
        tgt_rows = tgt_rows + jnp.dot(tgt_oh, plane,
                                      preferred_element_type=jnp.float32)

    # Single fused store per tile (lane-dense whenever 2*D is a multiple of 128;
    # padding each half to 128 lanes was rejected because it would reintroduce
    # a post-kernel copy to strip the padding).
    out_ref[...] = jnp.concatenate([src_rows, tgt_rows], axis=-1).astype(out_ref.dtype)


def _fallback(x: jax.Array, edge_index: jax.Array) -> jax.Array:
    # TODO(synk): large-N / odd-dtype path — keep x at memory_space=pl.ANY and
    # hand-roll a double-buffered per-row DMA gather (P4) instead of XLA gather.
    src, tgt = edge_index[0], edge_index[1]
    return jnp.concatenate([x[src], x[tgt]], axis=-1)


def edge_index_to_features(x: jax.Array, edge_index: jax.Array) -> jax.Array:
    """x: [N, D] float, edge_index: [2, E] int -> [E, 2*D]."""
    n, d = x.shape
    e = int(edge_index.shape[1])
    itemsize = jnp.dtype(x.dtype).itemsize

    if x.dtype not in (jnp.float32, jnp.bfloat16) or n > _ONE_HOT_MAX_N or e == 0:
        return _fallback(x, edge_index)

    n_planes = 1 if x.dtype == jnp.bfloat16 else 3

    # --- edge-tile size: ~2 MiB output tiles, one-hots capped at ~1 MiB total ---
    te = _TARGET_OUT_TILE_BYTES // max(1, 2 * d * itemsize)
    te = min(te, _TARGET_ONEHOT_BYTES // max(1, 2 * n))
    out_rows = _round_up(e, 8)
    te = max(8, min(_round_down(te, 8), out_rows))
    num_tiles = pl.cdiv(out_rows, te)
    e_pad = num_tiles * te

    # --- VMEM plan (per generation; counts Pallas' default 2-deep buffering of
    #     the resident planes block — pl.Buffered(1) would halve that but is
    #     left off; the budget is computed conservatively instead). ---
    planes_bytes = n_planes * n * d * 2
    edges_tile_bytes = te * 2 * 4
    out_tile_bytes = te * 2 * d * itemsize
    live_temporaries = 2 * te * n * 2 + 2 * te * d * 4        # one-hots + f32 accumulators
    required = (2 * planes_bytes + 2 * edges_tile_bytes + 2 * out_tile_bytes
                + live_temporaries)
    vmem_cap = _vmem_capacity_bytes()
    if required > int(0.8 * vmem_cap):
        return _fallback(x, edge_index)
    vmem_limit = int(min(int(0.9 * vmem_cap), max(required + (8 << 20), 32 << 20)))

    # --- pack edges: (num_tiles, TE, 2) int32, zero-padded (pad rows gather node
    #     0 and land only in masked / sliced-off output rows). ---
    edges = edge_index.astype(jnp.int32).T                     # (E, 2): col0=src, col1=tgt
    if e_pad != e:
        edges = jnp.pad(edges, ((0, e_pad - e), (0, 0)))
    edges = edges.reshape(num_tiles, te, 2)

    planes = _bf16_planes(x)                                   # (P, N, D) bf16

    # Megacore sharding only when edge traffic dominates the duplicated x fetch.
    out_bytes = out_rows * 2 * d * itemsize
    parallel = num_tiles > 1 and out_bytes >= 4 * planes_bytes
    dims = ("parallel",) if parallel else ("arbitrary",)

    bytes_accessed = planes_bytes * (2 if parallel else 1) + e_pad * 2 * 4 + out_bytes
    flops = 2 * n_planes * 2 * e_pad * n * d                   # two one-hot matmuls per plane

    grid_spec = pltpu.PrefetchScalarGridSpec(
        num_scalar_prefetch=0,
        grid=(num_tiles,),
        in_specs=[
            pl.BlockSpec((1, te, 2), lambda i: (i, 0, 0)),                 # edge tile
            pl.BlockSpec((n_planes, n, d), lambda i: (0, 0, 0)),           # resident x planes
        ],
        out_specs=pl.BlockSpec((te, 2 * d), lambda i: (i, 0)),
    )

    out = pl.pallas_call(
        _edge_concat_kernel,
        out_shape=jax.ShapeDtypeStruct((out_rows, 2 * d), x.dtype),
        grid_spec=grid_spec,
        compiler_params=pltpu.CompilerParams(
            dimension_semantics=dims,
            vmem_limit_bytes=vmem_limit,
        ),
        cost_estimate=pl.CostEstimate(
            flops=int(flops), transcendentals=0, bytes_accessed=int(bytes_accessed)
        ),
    )(edges, planes)

    return out if out_rows == e else out[:e]


if __name__ == "__main__":
    key = jax.random.PRNGKey(0)
    k_x, k_e = jax.random.split(key)

    N, D, E = 16, 32, 8  # small shapes: 16 nodes, 32-dim features, 8 edges
    x_gat_fin = jax.random.normal(k_x, (N, D), dtype=jnp.float32)
    edge_index = jax.random.randint(k_e, (2, E), 0, N, dtype=jnp.int32)

    out = edge_index_to_features(x_gat_fin, edge_index)
    out = jax.block_until_ready(out)

    # Pure-JAX reference (matches the PyTorch forward exactly).
    ref = jnp.concatenate(
        [x_gat_fin[edge_index[0]], x_gat_fin[edge_index[1]]], axis=-1
    )
    assert out.shape == (E, 2 * D), out.shape
    np.testing.assert_allclose(np.asarray(out), np.asarray(ref), rtol=0, atol=0)

    print("KERNEL_OK")
</pallas_src>

<mosaic_0001>
module attributes {stable_mosaic.version = 11 : i64} {
  func.func @_edge_concat_kernel(%arg0: i32, %arg1: memref<1x8x2xi32, #tpu.memory_space<vmem>>, %arg2: memref<3x16x32xbf16, #tpu.memory_space<vmem>>, %arg3: memref<8x64xf32, #tpu.memory_space<vmem>>) attributes {dimension_semantics = [#tpu.dimension_semantics<arbitrary>], iteration_bounds = array<i64: 1>, scalar_prefetch = 0 : i64, scratch_operands = 0 : i64, tpu.core_type = #tpu.core_type<tc>, window_params = [{transform_indices = @transform_0, window_bounds = array<i64: 1, 8, 2>}, {pipeline_mode = #tpu.pipeline_mode<synchronous>, transform_indices = @transform_1, window_bounds = array<i64: 3, 16, 32>}, {transform_indices = @transform_2, window_bounds = array<i64: 8, 64>}]} {
    %c0 = arith.constant 0 : index
    %c0_0 = arith.constant 0 : index
    %c0_1 = arith.constant 0 : index
    %0 = vector.load %arg1[%c0, %c0_0, %c0_1] : memref<1x8x2xi32, #tpu.memory_space<vmem>>, vector<1x8x2xi32>
    %1 = vector.shape_cast %0 : vector<1x8x2xi32> to vector<8x2xi32>
    %2 = tpu.iota {dimensions = array<i32: 1>} : vector<8x16xi32>
    %3 = vector.extract_strided_slice %1 {offsets = [0, 0], sizes = [8, 1], strides = [1, 1]} : vector<8x2xi32> to vector<8x1xi32>
    %4 = vector.broadcast %3 : vector<8x1xi32> to vector<8x16xi32>
    %5 = arith.cmpi eq, %4, %2 : vector<8x16xi32>
    %6 = arith.extui %5 : vector<8x16xi1> to vector<8x16xi32>
    %7 = arith.sitofp %6 : vector<8x16xi32> to vector<8x16xf32>
    %8 = arith.truncf %7 : vector<8x16xf32> to vector<8x16xbf16>
    %9 = vector.extract_strided_slice %1 {offsets = [0, 1], sizes = [8, 1], strides = [1, 1]} : vector<8x2xi32> to vector<8x1xi32>
    %10 = vector.broadcast %9 : vector<8x1xi32> to vector<8x16xi32>
    %11 = arith.cmpi eq, %10, %2 : vector<8x16xi32>
    %12 = arith.extui %11 : vector<8x16xi1> to vector<8x16xi32>
    %13 = arith.sitofp %12 : vector<8x16xi32> to vector<8x16xf32>
    %14 = arith.truncf %13 : vector<8x16xf32> to vector<8x16xbf16>
    %cst = arith.constant 0.000000e+00 : f32
    %15 = vector.broadcast %cst : f32 to vector<8x32xf32>
    %cst_2 = arith.constant 0.000000e+00 : f32
    %16 = vector.broadcast %cst_2 : f32 to vector<8x32xf32>
    %c0_3 = arith.constant 0 : index
    %c0_4 = arith.constant 0 : index
    %c0_5 = arith.constant 0 : index
    %17 = vector.load %arg2[%c0_3, %c0_4, %c0_5] : memref<3x16x32xbf16, #tpu.memory_space<vmem>>, vector<1x16x32xbf16>
    %18 = vector.shape_cast %17 : vector<1x16x32xbf16> to vector<16x32xbf16>
    %cst_6 = arith.constant dense<0.000000e+00> : vector<8x32xf32>
    %19 = tpu.matmul %8, %18, %cst_6 {dimension_numbers = #tpu.dot_dimension_numbers<[1], [0], [0], [1], [0, 0, 1, 1], [], []>} : vector<8x16xbf16>, vector<16x32xbf16>, vector<8x32xf32> -> vector<8x32xf32>
    %20 = arith.addf %15, %19 : vector<8x32xf32>
    %cst_7 = arith.constant dense<0.000000e+00> : vector<8x32xf32>
    %21 = tpu.matmul %14, %18, %cst_7 {dimension_numbers = #tpu.dot_dimension_numbers<[1], [0], [0], [1], [0, 0, 1, 1], [], []>} : vector<8x16xbf16>, vector<16x32xbf16>, vector<8x32xf32> -> vector<8x32xf32>
    %22 = arith.addf %16, %21 : vector<8x32xf32>
    %c1 = arith.constant 1 : index
    %c0_8 = arith.constant 0 : index
    %c0_9 = arith.constant 0 : index
    %23 = vector.load %arg2[%c1, %c0_8, %c0_9] : memref<3x16x32xbf16, #tpu.memory_space<vmem>>, vector<1x16x32xbf16>
    %24 = vector.shape_cast %23 : vector<1x16x32xbf16> to vector<16x32xbf16>
    %cst_10 = arith.constant dense<0.000000e+00> : vector<8x32xf32>
    %25 = tpu.matmul %8, %24, %cst_10 {dimension_numbers = #tpu.dot_dimension_numbers<[1], [0], [0], [1], [0, 0, 1, 1], [], []>} : vector<8x16xbf16>, vector<16x32xbf16>, vector<8x32xf32> -> vector<8x32xf32>
    %26 = arith.addf %20, %25 : vector<8x32xf32>
    %cst_11 = arith.constant dense<0.000000e+00> : vector<8x32xf32>
    %27 = tpu.matmul %14, %24, %cst_11 {dimension_numbers = #tpu.dot_dimension_numbers<[1], [0], [0], [1], [0, 0, 1, 1], [], []>} : vector<8x16xbf16>, vector<16x32xbf16>, vector<8x32xf32> -> vector<8x32xf32>
    %28 = arith.addf %22, %27 : vector<8x32xf32>
    %c2 = arith.constant 2 : index
    %c0_12 = arith.constant 0 : index
    %c0_13 = arith.constant 0 : index
    %29 = vector.load %arg2[%c2, %c0_12, %c0_13] : memref<3x16x32xbf16, #tpu.memory_space<vmem>>, vector<1x16x32xbf16>
    %30 = vector.shape_cast %29 : vector<1x16x32xbf16> to vector<16x32xbf16>
    %cst_14 = arith.constant dense<0.000000e+00> : vector<8x32xf32>
    %31 = tpu.matmul %8, %30, %cst_14 {dimension_numbers = #tpu.dot_dimension_numbers<[1], [0], [0], [1], [0, 0, 1, 1], [], []>} : vector<8x16xbf16>, vector<16x32xbf16>, vector<8x32xf32> -> vector<8x32xf32>
    %32 = arith.addf %26, %31 : vector<8x32xf32>
    %cst_15 = arith.constant dense<0.000000e+00> : vector<8x32xf32>
    %33 = tpu.matmul %14, %30, %cst_15 {dimension_numbers = #tpu.dot_dimension_numbers<[1], [0], [0], [1], [0, 0, 1, 1], [], []>} : vector<8x16xbf16>, vector<16x32xbf16>, vector<8x32xf32> -> vector<8x32xf32>
    %34 = arith.addf %28, %33 : vector<8x32xf32>
    %35 = tpu.concatenate %32, %34 in 1 : vector<8x32xf32>, vector<8x32xf32> -> vector<8x64xf32>
    %c0_16 = arith.constant 0 : index
    %c0_17 = arith.constant 0 : index
    %36 = vector.load %arg3[%c0_16, %c0_17] : memref<8x64xf32, #tpu.memory_space<vmem>>, vector<8x64xf32>
    tpu.vector_store %arg3[%c0_16, %c0_17], %35 {strides = array<i32>} : memref<8x64xf32, #tpu.memory_space<vmem>>, vector<8x64xf32>,
    return
  }
  func.func @transform_0(%arg0: i32) -> (i32, i32, i32) {
    %c0_i32 = arith.constant 0 : i32
    %c0_i32_0 = arith.constant 0 : i32
    %c0_i32_1 = arith.constant 0 : i32
    return %arg0, %c0_i32, %c0_i32_0 : i32, i32, i32
  }
  func.func @transform_1(%arg0: i32) -> (i32, i32, i32) {
    %c0_i32 = arith.constant 0 : i32
    %c0_i32_0 = arith.constant 0 : i32
    %c0_i32_1 = arith.constant 0 : i32
    %c0_i32_2 = arith.constant 0 : i32
    return %c0_i32, %c0_i32_0, %c0_i32_1 : i32, i32, i32
  }
  func.func @transform_2(%arg0: i32) -> (i32, i32) {
    %c0_i32 = arith.constant 0 : i32
    %c0_i32_0 = arith.constant 0 : i32
    return %arg0, %c0_i32 : i32, i32
  }
}

</mosaic_0001>

<llo_original>
// kernel: tpu_custom_call.1
$region0: #{tpu_custom_call.1}
  #allocation0 [shape = 'u32[]', space=smem, size = 0x4, offset = 0x4, fixed_abs, tag = 'smem constant byte address 0x4 - core index']
  #allocation1 [shape = 'u32[144,128]{1,0:T(1,128)}', space=vmem, size = 0x12000, scoped, tag = 'internal scratch']
  %s0 = inlined_call_operand.vmem [shape: s32[1,8,2], index: 0, kind: input, shape index: {}]
  %s1 = inlined_call_operand.hbm [shape: bf16[3,16,32], index: 1, kind: input, shape index: {}]
  %s2 = inlined_call_operand.hbm [shape: f32[8,64], index: 2, kind: output, shape index: {}]
  %s3 = sld [smem:[#allocation0]]
  $region22: #{tpu_custom_call.1} parent=0
    _
  %s5 = ssub.s32 1, %s3
  %s6 = scalar_select 0, %s5, %s3
  $region1: #{tpu_custom_call.1} parent=0
    #allocation2 [shape = 'u8[12288]{0}', space=vmem, size = 0x3000, scoped, tag = 'input window, operand 1, single buffered']
    #allocation3 [shape = 's32[1]{0}', space=sflag, size = 0x4, scoped, tag = 'scoped memory for tpu_custom_call.1']
    #allocation4 [shape = 's32[1]{0}', space=sflag, size = 0x4, scoped, tag = 'scoped memory for tpu_custom_call.1']
    #allocation5 [shape = 'u8[4096]{0}', space=vmem, size = 0x1000, scoped, tag = 'output window, operand 0, single buffered']
    %7 = vsyncpa [#allocation3], 0
    %8 = vsyncpa [#allocation4], 0
    // Predicated region
    $region2: #{tpu_custom_call.1} parent=1 // pred_check
      _
    $region3: #{tpu_custom_call.1} parent=1 // pred_check_branch
      %10 = sbr.rel (0) target = $region5
    $region4: #{tpu_custom_call.1} parent=1 // pred_region
      _
    $region5: #{tpu_custom_call.1} parent=1 // pred_fallthru
      _
    // Predicated region
    $region6: #{tpu_custom_call.1} parent=1 // pred_check
      _
    $region7: #{tpu_custom_call.1} parent=1 // pred_check_branch
      %12 = sbr.rel (0) target = $region9
    $region8: #{tpu_custom_call.1} parent=1 // pred_region
      %s14 = ssub.s32 384, 384
      %15 = vsyncadd [#allocation3], %s14
      %s16 = sshll.u32 [#allocation2], 4
      %s17 = int_to_ptr.vmem [resolvable:$true] %s16
      %22 = dma.hbm_to_vmem [thread:$0]  %s1, 384, %s17, [#allocation3], 64, 64, 4
    $region9: #{tpu_custom_call.1} parent=1 // pred_fallthru
      _
    // Predicated region
    $region10: #{tpu_custom_call.1} parent=1 // pred_check
      _
    $region11: #{tpu_custom_call.1} parent=1 // pred_check_branch
      %24 = sbr.rel (0) target = $region13
    $region12: #{tpu_custom_call.1} parent=1 // pred_region
      %25 = dma.done [#allocation3], 384
    $region13: #{tpu_custom_call.1} parent=1 // pred_fallthru
      _
    %v27 = vld [vmem:[%s0] sm:$0xff]
    %v28 = vlaneseq
    %v29 = vand.u32 %v28, 127
    %30 = vset.pattern.permute.xlu0 0
    %31 = vperm.xlu0 %30, %v27
    %v32 = vpop.permute.xlu0 %31
    %vm33 = vcmp.eq.s32.totalorder %v32, %v29
    %v34 = vsel %vm33, 1, 0
    %v35 = vcvt.s32.f32 %v34
    %v36 = vpack.c.bf16 %v35, %v35
    %37 = vset.pattern.permute.xlu0 1
    %38 = vperm.xlu0 %37, %v27
    %v39 = vpop.permute.xlu0 %38
    %vm40 = vcmp.eq.s32.totalorder %v39, %v29
    %v41 = vsel %vm40, 1, 0
    %v42 = vcvt.s32.f32 %v41
    %v43 = vpack.c.bf16 %v42, %v42
    %v44 = vld [vmem:[#allocation2] sm:$0xf]
    %v45 = vld [vmem:[#allocation2 + $0x4] sm:$0xf]
    %s46 = scalar_lea.vmem [#allocation2], 8
    %v47 = vld [vmem:[%s46] sm:$0xf]
    %v48 = vld [vmem:[%s46 + $0x4] sm:$0xf]
    %v51 = vunpack.c.l.b16 %v47
    %v52 = vunpack.c.l.b16 %v48
    %v53 = vpack.c.b16 %v52, %v51
    %vm55 = vcmask 130048
    %v57 = vsel %vm55, %v36, 0
    %59 = vmatprep.subr.bf16.mxu0 0
    %60 = vmatpush1.bf16.msra.mxu0 %v53
    %61 = vmatprep.subr.bf16.mxu0 0
    %62 = vmatpush1.bf16.msra.mxu0 0
    %63 = vmatprep.subr.bf16.mxu0 0
    %64 = vmatpush1.bf16.msra.mxu0 0
    %65 = vmatprep.subr.bf16.mxu0 0
    %66 = vmatpush1.bf16.msra.mxu0 0
    %67 = vmatprep.subr.bf16.mxu0 0
    %68 = vmatpush1.bf16.msra.mxu0 0
    %69 = vmatprep.subr.bf16.mxu0 0
    %70 = vmatpush1.bf16.msra.mxu0 0
    %71 = vmatprep.subr.bf16.mxu0 0
    %72 = vmatpush1.bf16.msra.mxu0 0
    %73 = vmatprep.subr.bf16.mxu0 0
    %74 = vmatpush1.bf16.msra.mxu0 0
    %75 = vmatprep.subr.bf16.mxu0 0
    %76 = vmatpush1.bf16.msra.mxu0 0
    %77 = vmatprep.subr.bf16.mxu0 0
    %78 = vmatpush1.bf16.msra.mxu0 0
    %79 = vmatprep.subr.bf16.mxu0 0
    %80 = vmatpush1.bf16.msra.mxu0 0
    %81 = vmatprep.subr.bf16.mxu0 0
    %82 = vmatpush1.bf16.msra.mxu0 0
    %83 = vmatprep.subr.bf16.mxu0 0
    %84 = vmatpush1.bf16.msra.mxu0 0
    %85 = vmatprep.subr.bf16.mxu0 0
    %86 = vmatpush1.bf16.msra.mxu0 0
    %87 = vmatprep.subr.bf16.mxu0 0
    %88 = vmatpush1.bf16.msra.mxu0 0
    %89 = vmatprep.subr.bf16.mxu0 0
    %90 = vmatpush1.bf16.msra.mxu0 0
    %91 = vmatprep.mubr.bf16.mxu0 0
    %92 = vmatmul.mubr.bf16.gmra.mrb[0].mxu0 %v57
    %v93 = vpop.f32.mrb[0].mxu0
    %v94 = vadd.f32 0.0, %v93
    %v95 = vpop.f32.mrb[0].mxu0
    %v96 = vpop.f32.mrb[0].mxu0
    %v97 = vpop.f32.mrb[0].mxu0
    %98 = vdwg.mxu0
    %v101 = vunpack.c.l.b16 %v44
    %v102 = vunpack.c.l.b16 %v45
    %v103 = vpack.c.b16 %v102, %v101
    %105 = vmatprep.subr.bf16.mxu0 0
    %106 = vmatpush1.bf16.msra.mxu0 %v103
    %107 = vmatprep.subr.bf16.mxu0 0
    %108 = vmatpush1.bf16.msra.mxu0 0
    %109 = vmatprep.subr.bf16.mxu0 0
    %110 = vmatpush1.bf16.msra.mxu0 0
    %111 = vmatprep.subr.bf16.mxu0 0
    %112 = vmatpush1.bf16.msra.mxu0 0
    %113 = vmatprep.subr.bf16.mxu0 0
    %114 = vmatpush1.bf16.msra.mxu0 0
    %115 = vmatprep.subr.bf16.mxu0 0
    %116 = vmatpush1.bf16.msra.mxu0 0
    %117 = vmatprep.subr.bf16.mxu0 0
    %118 = vmatpush1.bf16.msra.mxu0 0
    %119 = vmatprep.subr.bf16.mxu0 0
    %120 = vmatpush1.bf16.msra.mxu0 0
    %121 = vmatprep.subr.bf16.mxu0 0
    %122 = vmatpush1.bf16.msra.mxu0 0
    %123 = vmatprep.subr.bf16.mxu0 0
    %124 = vmatpush1.bf16.msra.mxu0 0
    %125 = vmatprep.subr.bf16.mxu0 0
    %126 = vmatpush1.bf16.msra.mxu0 0
    %127 = vmatprep.subr.bf16.mxu0 0
    %128 = vmatpush1.bf16.msra.mxu0 0
    %129 = vmatprep.subr.bf16.mxu0 0
    %130 = vmatpush1.bf16.msra.mxu0 0
    %131 = vmatprep.subr.bf16.mxu0 0
    %132 = vmatpush1.bf16.msra.mxu0 0
    %133 = vmatprep.subr.bf16.mxu0 0
    %134 = vmatpush1.bf16.msra.mxu0 0
    %135 = vmatprep.subr.bf16.mxu0 0
    %136 = vmatpush1.bf16.msra.mxu0 0
    %137 = vmatprep.mubr.bf16.mxu0 0
    %138 = vmatmul.mubr.bf16.gmra.mrb[0].mxu0 %v57
    %v139 = vpop.f32.mrb[0].mxu0
    %v140 = vadd.f32 %v94, %v139
    %v141 = vpop.f32.mrb[0].mxu0
    %v142 = vpop.f32.mrb[0].mxu0
    %v143 = vpop.f32.mrb[0].mxu0
    %144 = vdwg.mxu0
    %v146 = vsel %vm55, %v43, 0
    %148 = vmatprep.subr.bf16.mxu0 0
    %149 = vmatpush1.bf16.msra.mxu0 %v53
    %150 = vmatprep.subr.bf16.mxu0 0
    %151 = vmatpush1.bf16.msra.mxu0 0
    %152 = vmatprep.subr.bf16.mxu0 0
    %153 = vmatpush1.bf16.msra.mxu0 0
    %154 = vmatprep.subr.bf16.mxu0 0
    %155 = vmatpush1.bf16.msra.mxu0 0
    %156 = vmatprep.subr.bf16.mxu0 0
    %157 = vmatpush1.bf16.msra.mxu0 0
    %158 = vmatprep.subr.bf16.mxu0 0
    %159 = vmatpush1.bf16.msra.mxu0 0
    %160 = vmatprep.subr.bf16.mxu0 0
    %161 = vmatpush1.bf16.msra.mxu0 0
    %162 = vmatprep.subr.bf16.mxu0 0
    %163 = vmatpush1.bf16.msra.mxu0 0
    %164 = vmatprep.subr.bf16.mxu0 0
    %165 = vmatpush1.bf16.msra.mxu0 0
    %166 = vmatprep.subr.bf16.mxu0 0
    %167 = vmatpush1.bf16.msra.mxu0 0
    %168 = vmatprep.subr.bf16.mxu0 0
    %169 = vmatpush1.bf16.msra.mxu0 0
    %170 = vmatprep.subr.bf16.mxu0 0
    %171 = vmatpush1.bf16.msra.mxu0 0
    %172 = vmatprep.subr.bf16.mxu0 0
    %173 = vmatpush1.bf16.msra.mxu0 0
    %174 = vmatprep.subr.bf16.mxu0 0
    %175 = vmatpush1.bf16.msra.mxu0 0
    %176 = vmatprep.subr.bf16.mxu0 0
    %177 = vmatpush1.bf16.msra.mxu0 0
    %178 = vmatprep.subr.bf16.mxu0 0
    %179 = vmatpush1.bf16.msra.mxu0 0
    %180 = vmatprep.mubr.bf16.mxu0 0
    %181 = vmatmul.mubr.bf16.gmra.mrb[0].mxu0 %v146
    %v182 = vpop.f32.mrb[0].mxu0
    %v183 = vadd.f32 0.0, %v182
    %v184 = vpop.f32.mrb[0].mxu0
    %v185 = vpop.f32.mrb[0].mxu0
    %v186 = vpop.f32.mrb[0].mxu0
    %187 = vdwg.mxu0
    %188 = vmatprep.subr.bf16.mxu0 0
    %189 = vmatpush1.bf16.msra.mxu0 %v103
    %190 = vmatprep.subr.bf16.mxu0 0
    %191 = vmatpush1.bf16.msra.mxu0 0
    %192 = vmatprep.subr.bf16.mxu0 0
    %193 = vmatpush1.bf16.msra.mxu0 0
    %194 = vmatprep.subr.bf16.mxu0 0
    %195 = vmatpush1.bf16.msra.mxu0 0
    %196 = vmatprep.subr.bf16.mxu0 0
    %197 = vmatpush1.bf16.msra.mxu0 0
    %198 = vmatprep.subr.bf16.mxu0 0
    %199 = vmatpush1.bf16.msra.mxu0 0
    %200 = vmatprep.subr.bf16.mxu0 0
    %201 = vmatpush1.bf16.msra.mxu0 0
    %202 = vmatprep.subr.bf16.mxu0 0
    %203 = vmatpush1.bf16.msra.mxu0 0
    %204 = vmatprep.subr.bf16.mxu0 0
    %205 = vmatpush1.bf16.msra.mxu0 0
    %206 = vmatprep.subr.bf16.mxu0 0
    %207 = vmatpush1.bf16.msra.mxu0 0
    %208 = vmatprep.subr.bf16.mxu0 0
    %209 = vmatpush1.bf16.msra.mxu0 0
    %210 = vmatprep.subr.bf16.mxu0 0
    %211 = vmatpush1.bf16.msra.mxu0 0
    %212 = vmatprep.subr.bf16.mxu0 0
    %213 = vmatpush1.bf16.msra.mxu0 0
    %214 = vmatprep.subr.bf16.mxu0 0
    %215 = vmatpush1.bf16.msra.mxu0 0
    %216 = vmatprep.subr.bf16.mxu0 0
    %217 = vmatpush1.bf16.msra.mxu0 0
    %218 = vmatprep.subr.bf16.mxu0 0
    %219 = vmatpush1.bf16.msra.mxu0 0
    %220 = vmatprep.mubr.bf16.mxu0 0
    %221 = vmatmul.mubr.bf16.gmra.mrb[0].mxu0 %v146
    %v222 = vpop.f32.mrb[0].mxu0
    %v223 = vadd.f32 %v183, %v222
    %v224 = vpop.f32.mrb[0].mxu0
    %v225 = vpop.f32.mrb[0].mxu0
    %v226 = vpop.f32.mrb[0].mxu0
    %227 = vdwg.mxu0
    %s228 = scalar_lea.vmem [#allocation2], 16
    %v229 = vld [vmem:[%s228] sm:$0xf]
    %v230 = vld [vmem:[%s228 + $0x4] sm:$0xf]
    %v233 = vunpack.c.l.b16 %v229
    %v234 = vunpack.c.l.b16 %v230
    %v235 = vpack.c.b16 %v234, %v233
    %237 = vmatprep.subr.bf16.mxu0 0
    %238 = vmatpush1.bf16.msra.mxu0 %v235
    %239 = vmatprep.subr.bf16.mxu0 0
    %240 = vmatpush1.bf16.msra.mxu0 0
    %241 = vmatprep.subr.bf16.mxu0 0
    %242 = vmatpush1.bf16.msra.mxu0 0
    %243 = vmatprep.subr.bf16.mxu0 0
    %244 = vmatpush1.bf16.msra.mxu0 0
    %245 = vmatprep.subr.bf16.mxu0 0
    %246 = vmatpush1.bf16.msra.mxu0 0
    %247 = vmatprep.subr.bf16.mxu0 0
    %248 = vmatpush1.bf16.msra.mxu0 0
    %249 = vmatprep.subr.bf16.mxu0 0
    %250 = vmatpush1.bf16.msra.mxu0 0
    %251 = vmatprep.subr.bf16.mxu0 0
    %252 = vmatpush1.bf16.msra.mxu0 0
    %253 = vmatprep.subr.bf16.mxu0 0
    %254 = vmatpush1.bf16.msra.mxu0 0
    %255 = vmatprep.subr.bf16.mxu0 0
    %256 = vmatpush1.bf16.msra.mxu0 0
    %257 = vmatprep.subr.bf16.mxu0 0
    %258 = vmatpush1.bf16.msra.mxu0 0
    %259 = vmatprep.subr.bf16.mxu0 0
    %260 = vmatpush1.bf16.msra.mxu0 0
    %261 = vmatprep.subr.bf16.mxu0 0
    %262 = vmatpush1.bf16.msra.mxu0 0
    %263 = vmatprep.subr.bf16.mxu0 0
    %264 = vmatpush1.bf16.msra.mxu0 0
    %265 = vmatprep.subr.bf16.mxu0 0
    %266 = vmatpush1.bf16.msra.mxu0 0
    %267 = vmatprep.subr.bf16.mxu0 0
    %268 = vmatpush1.bf16.msra.mxu0 0
    %269 = vmatprep.mubr.bf16.mxu0 0
    %270 = vmatmul.mubr.bf16.gmra.mrb[0].mxu0 %v57
    %v271 = vpop.f32.mrb[0].mxu0
    %v272 = vadd.f32 0.0, %v271
    %v273 = vpop.f32.mrb[0].mxu0
    %v274 = vpop.f32.mrb[0].mxu0
    %v275 = vpop.f32.mrb[0].mxu0
    %276 = vdwg.mxu0
    %v277 = vadd.f32 %v140, %v272
    %278 = vmatprep.subr.bf16.mxu0 0
    %279 = vmatpush1.bf16.msra.mxu0 %v235
    %280 = vmatprep.subr.bf16.mxu0 0
    %281 = vmatpush1.bf16.msra.mxu0 0
    %282 = vmatprep.subr.bf16.mxu0 0
    %283 = vmatpush1.bf16.msra.mxu0 0
    %284 = vmatprep.subr.bf16.mxu0 0
    %285 = vmatpush1.bf16.msra.mxu0 0
    %286 = vmatprep.subr.bf16.mxu0 0
    %287 = vmatpush1.bf16.msra.mxu0 0
    %288 = vmatprep.subr.bf16.mxu0 0
    %289 = vmatpush1.bf16.msra.mxu0 0
    %290 = vmatprep.subr.bf16.mxu0 0
    %291 = vmatpush1.bf16.msra.mxu0 0
    %292 = vmatprep.subr.bf16.mxu0 0
    %293 = vmatpush1.bf16.msra.mxu0 0
    %294 = vmatprep.subr.bf16.mxu0 0
    %295 = vmatpush1.bf16.msra.mxu0 0
    %296 = vmatprep.subr.bf16.mxu0 0
    %297 = vmatpush1.bf16.msra.mxu0 0
    %298 = vmatprep.subr.bf16.mxu0 0
    %299 = vmatpush1.bf16.msra.mxu0 0
    %300 = vmatprep.subr.bf16.mxu0 0
    %301 = vmatpush1.bf16.msra.mxu0 0
    %302 = vmatprep.subr.bf16.mxu0 0
    %303 = vmatpush1.bf16.msra.mxu0 0
    %304 = vmatprep.subr.bf16.mxu0 0
    %305 = vmatpush1.bf16.msra.mxu0 0
    %306 = vmatprep.subr.bf16.mxu0 0
    %307 = vmatpush1.bf16.msra.mxu0 0
    %308 = vmatprep.subr.bf16.mxu0 0
    %309 = vmatpush1.bf16.msra.mxu0 0
    %310 = vmatprep.mubr.bf16.mxu0 0
    %311 = vmatmul.mubr.bf16.gmra.mrb[0].mxu0 %v146
    %v312 = vpop.f32.mrb[0].mxu0
    %v313 = vadd.f32 0.0, %v312
    %v314 = vpop.f32.mrb[0].mxu0
    %v315 = vpop.f32.mrb[0].mxu0
    %v316 = vpop.f32.mrb[0].mxu0
    %317 = vdwg.mxu0
    %v318 = vadd.f32 %v223, %v313
    %320 = vrot.lane.b32.xlu0 %v318, 32
    %v321 = vpop.permute.xlu0 %320
    %vm323 = vcmask 261120
    %v324 = vsel %vm323, %v277, %v321
    %vm325 = vcmask 523264
    %326 = vst.msk [vmem:[#allocation5] sm:$0xff] %vm325, %v324
    // Predicated region
    $region14: #{tpu_custom_call.1} parent=1 // pred_check
      _
    $region15: #{tpu_custom_call.1} parent=1 // pred_check_branch
      %328 = sbr.rel (0) target = $region17
    $region16: #{tpu_custom_call.1} parent=1 // pred_region
      %s330 = ssub.s32 128, 128
      %331 = vsyncadd [#allocation4], %s330
      %s333 = sshll.u32 [#allocation5], 4
      %s334 = int_to_ptr.vmem [resolvable:$true] %s333
      %336 = dma.vmem_to_hbm [thread:$0]  %s334, 128, %s2, [#allocation4]
    $region17: #{tpu_custom_call.1} parent=1 // pred_fallthru
      _
    // Predicated region
    $region18: #{tpu_custom_call.1} parent=1 // pred_check
      _
    $region19: #{tpu_custom_call.1} parent=1 // pred_check_branch
      %338 = sbr.rel (0) target = $region21
    $region20: #{tpu_custom_call.1} parent=1 // pred_region
      %339 = dma.done [#allocation4], 128
    $region21: #{tpu_custom_call.1} parent=1 // pred_fallthru
      _
    %340 = vsyncpa [#allocation3], 1
    %341 = vsyncpa [#allocation4], 1

</llo_original>
